<compile_context>
chip_gen: v5e
topology: v5e:2x2
jax: 0.10.0
libtpu: 0.0.40
codegen_flags: <defaults>
</compile_context>

<pallas_src>
import functools

import jax
import jax.numpy as jnp
from jax.experimental import pallas as pl
from jax.experimental.pallas import tpu as pltpu


def _round_up(x, m):
    return ((x + m - 1) // m) * m


def cross_attn_kernel(qf_ref, kf_ref, mask_ref,
                      wq_ref, bq_ref, wkv_ref, bkv_ref, wo_ref, bo_ref,
                      out_ref, attn_ref, *, scale):
    # Activations -> bf16 at MXU inputs, accumulate in f32.
    qf = qf_ref[...].astype(jnp.bfloat16)          # (TQ, Dp)
    kf = kf_ref[...].astype(jnp.bfloat16)          # (Nkp, Dp)

    Dp = wq_ref.shape[1]

    # Q projection.
    Q = jnp.dot(qf, wq_ref[...], preferred_element_type=jnp.float32) + bq_ref[...]

    # Fused K|V projection: one wide (Dp, 2*Dp) MXU pass, slice the result.
    # (Recomputed per query tile; cheap relative to scores/attended for the
    #  resident-K design, and grid==1 at these sizes.)
    KV = jnp.dot(kf, wkv_ref[...], preferred_element_type=jnp.float32) + bkv_ref[...]
    K = KV[:, :Dp]                                  # (Nkp, Dp)
    V = KV[:, Dp:]                                  # (Nkp, Dp)

    # Q @ K^T without materializing a transpose: contract feature dims directly.
    scores = jax.lax.dot_general(
        Q.astype(jnp.bfloat16), K.astype(jnp.bfloat16),
        dimension_numbers=(((1,), (1,)), ((), ())),
        preferred_element_type=jnp.float32) * jnp.float32(scale)   # (TQ, Nkp)

    mask = mask_ref[...] > jnp.float32(0.5)         # (TQ, Nkp), lane-dense input

    neg_inf = jnp.float32(-jnp.inf)
    masked = jnp.where(mask, scores, neg_inf)

    # Numerically stable masked softmax, all element-wise math in f32.
    # Fully-masked rows (incl. padded query rows) -> all zeros, matching
    # torch.nan_to_num(softmax(...), nan=0.0).
    row_max = jnp.max(masked, axis=-1, keepdims=True)
    row_max = jnp.where(jnp.isfinite(row_max), row_max, jnp.float32(0.0))
    p = jnp.where(mask, jnp.exp(masked - row_max), jnp.float32(0.0))
    denom = jnp.sum(p, axis=-1, keepdims=True)
    has_any = denom > jnp.float32(0.0)
    inv = pl.reciprocal(jnp.where(has_any, denom, jnp.float32(1.0)), approx=True)
    attn = jnp.where(has_any, p * inv, jnp.float32(0.0))

    attn_ref[...] = attn

    attended = jnp.dot(attn.astype(jnp.bfloat16), V.astype(jnp.bfloat16),
                       preferred_element_type=jnp.float32)          # (TQ, Dp)
    out_ref[...] = jnp.dot(attended.astype(jnp.bfloat16), wo_ref[...],
                           preferred_element_type=jnp.float32) + bo_ref[...]


def simple_cross_attention(q_feat, k_feat, q_batch, k_batch, params):
    """params: wq,wk,wv,wo are (dim, dim) already transposed for x @ W;
    bq,bk,bv,bo are (1, dim). All float32 masters; kernel uses bf16 weights."""
    Nq, dim = q_feat.shape
    Nk = k_feat.shape[0]
    f32 = jnp.float32

    # Hardware-friendly padded sizes: lanes (128) on feature/key dims,
    # sublanes (8) on the query dim; query-tile grid for larger Nq.
    Dp = _round_up(dim, 128)
    Nkp = _round_up(Nk, 128)
    if Nq >= 128:
        TQ = 128
        Nqp = _round_up(Nq, TQ)
    else:
        Nqp = _round_up(Nq, 8)
        TQ = Nqp
    grid = (Nqp // TQ,)

    def pad2(x, r, c):
        return jnp.pad(x, ((0, r - x.shape[0]), (0, c - x.shape[1])))

    qf = pad2(q_feat.astype(f32), Nqp, Dp)
    kf = pad2(k_feat.astype(f32), Nkp, Dp)

    # Precompute the batch-match mask lane-dense; padded rows/cols use
    # non-matching sentinels so they are always masked out.
    qb = jnp.pad(q_batch.astype(jnp.int32), (0, Nqp - Nq), constant_values=-1)
    kb = jnp.pad(k_batch.astype(jnp.int32), (0, Nkp - Nk), constant_values=-2)
    mask = (qb[:, None] == kb[None, :]).astype(f32)          # (Nqp, Nkp)

    # Weights: padded, bf16 in HBM; K|V fused into one (Dp, 2*Dp) matrix.
    wq = pad2(params["wq"], Dp, Dp).astype(jnp.bfloat16)
    wo = pad2(params["wo"], Dp, Dp).astype(jnp.bfloat16)
    wkv = jnp.concatenate([pad2(params["wk"], Dp, Dp),
                           pad2(params["wv"], Dp, Dp)], axis=1).astype(jnp.bfloat16)
    bq = pad2(params["bq"], 1, Dp)
    bo = pad2(params["bo"], 1, Dp)
    bkv = jnp.concatenate([pad2(params["bk"], 1, Dp),
                           pad2(params["bv"], 1, Dp)], axis=1)

    kernel = functools.partial(cross_attn_kernel, scale=1.0 / (dim ** 0.5))

    const_spec = lambda shape: pl.BlockSpec(shape, lambda i: (0, 0))

    out, attn = pl.pallas_call(
        kernel,
        out_shape=(jax.ShapeDtypeStruct((Nqp, Dp), f32),
                   jax.ShapeDtypeStruct((Nqp, Nkp), f32)),
        grid=grid,
        in_specs=[
            pl.BlockSpec((TQ, Dp), lambda i: (i, 0)),        # q_feat tile
            const_spec((Nkp, Dp)),                           # k_feat (resident)
            pl.BlockSpec((TQ, Nkp), lambda i: (i, 0)),       # mask tile
            const_spec((Dp, Dp)), const_spec((1, Dp)),       # wq, bq
            const_spec((Dp, 2 * Dp)), const_spec((1, 2 * Dp)),  # wkv, bkv
            const_spec((Dp, Dp)), const_spec((1, Dp)),       # wo, bo
        ],
        out_specs=(pl.BlockSpec((TQ, Dp), lambda i: (i, 0)),
                   pl.BlockSpec((TQ, Nkp), lambda i: (i, 0))),
        compiler_params=pltpu.CompilerParams(
            dimension_semantics=("parallel",),               # 2 TCs on v7x
            vmem_limit_bytes=64 * 1024 * 1024),
    )(qf, kf, mask, wq, bq, wkv, bkv, wo, bo)

    return out[:Nq, :dim], attn[:Nq, :Nk]


def init_params(key, dim):
    """Deterministic init matching nn.Linear shapes (weights stored transposed)."""
    ks = jax.random.split(key, 8)
    bound = 1.0 / (dim ** 0.5)

    def lin(kw, kb):
        w = jax.random.uniform(kw, (dim, dim), jnp.float32, -bound, bound)  # (in, out)
        b = jax.random.uniform(kb, (1, dim), jnp.float32, -bound, bound)
        return w, b

    wq, bq = lin(ks[0], ks[1])
    wk, bk = lin(ks[2], ks[3])
    wv, bv = lin(ks[4], ks[5])
    wo, bo = lin(ks[6], ks[7])
    return dict(wq=wq, bq=bq, wk=wk, bk=bk, wv=wv, bv=bv, wo=wo, bo=bo)


def reference(q_feat, k_feat, q_batch, k_batch, p):
    """Pure-JAX f32 reference mirroring the PyTorch forward."""
    Q = q_feat @ p["wq"] + p["bq"]
    K = k_feat @ p["wk"] + p["bk"]
    V = k_feat @ p["wv"] + p["bv"]
    scores = (Q @ K.T) / (Q.shape[-1] ** 0.5)
    mask = q_batch[:, None] == k_batch[None, :]
    scores = jnp.where(mask, scores, -jnp.inf)
    attn = jax.nn.softmax(scores, axis=-1)
    attn = jnp.nan_to_num(attn, nan=0.0)
    attended = (attn @ V) @ p["wo"] + p["bo"]
    return attended, attn


if __name__ == "__main__":
    dim = 32
    Nq, Nk = 8, 8

    key = jax.random.PRNGKey(0)
    kq, kk, kp = jax.random.split(key, 3)

    q_feat = jax.random.normal(kq, (Nq, dim), jnp.float32)
    k_feat = jax.random.normal(kk, (Nk, dim), jnp.float32)
    # batch id 3 for the last two queries has no matching keys -> exercises
    # the fully-masked-row / nan_to_num path.
    q_batch = jnp.array([0, 0, 1, 1, 2, 2, 3, 3], dtype=jnp.int32)
    k_batch = jnp.array([0, 0, 0, 1, 1, 1, 2, 2], dtype=jnp.int32)

    params = init_params(kp, dim)

    attended, attn = simple_cross_attention(q_feat, k_feat, q_batch, k_batch, params)
    attended = jax.block_until_ready(attended)
    attn = jax.block_until_ready(attn)

    ref_att, ref_attn = reference(q_feat, k_feat, q_batch, k_batch, params)
    # Tolerances account for bf16 MXU inputs (f32 accumulation) in the kernel
    # vs. the pure-f32 reference.
    assert attended.shape == ref_att.shape and attn.shape == ref_attn.shape
    assert jnp.allclose(attn, ref_attn, atol=3e-2, rtol=3e-2), "attn mismatch"
    assert jnp.allclose(attended, ref_att, atol=6e-2, rtol=5e-2), "attended mismatch"

    print("KERNEL_OK")
</pallas_src>

<mosaic_0001>
module attributes {stable_mosaic.version = 11 : i64} {
  func.func @cross_attn_kernel(%arg0: i32, %arg1: memref<8x128xf32, #tpu.memory_space<vmem>>, %arg2: memref<128x128xf32, #tpu.memory_space<vmem>>, %arg3: memref<8x128xf32, #tpu.memory_space<vmem>>, %arg4: memref<128x128xbf16, #tpu.memory_space<vmem>>, %arg5: memref<1x128xf32, #tpu.memory_space<vmem>>, %arg6: memref<128x256xbf16, #tpu.memory_space<vmem>>, %arg7: memref<1x256xf32, #tpu.memory_space<vmem>>, %arg8: memref<128x128xbf16, #tpu.memory_space<vmem>>, %arg9: memref<1x128xf32, #tpu.memory_space<vmem>>, %arg10: memref<8x128xf32, #tpu.memory_space<vmem>>, %arg11: memref<8x128xf32, #tpu.memory_space<vmem>>) attributes {dimension_semantics = [#tpu.dimension_semantics<parallel>], iteration_bounds = array<i64: 1>, scalar_prefetch = 0 : i64, scratch_operands = 0 : i64, tpu.core_type = #tpu.core_type<tc>, window_params = [{transform_indices = @transform_0, window_bounds = array<i64: 8, 128>}, {pipeline_mode = #tpu.pipeline_mode<synchronous>, transform_indices = @transform_1, window_bounds = array<i64: 128, 128>}, {transform_indices = @transform_2, window_bounds = array<i64: 8, 128>}, {pipeline_mode = #tpu.pipeline_mode<synchronous>, transform_indices = @transform_3, window_bounds = array<i64: 128, 128>}, {pipeline_mode = #tpu.pipeline_mode<synchronous>, transform_indices = @transform_4, window_bounds = array<i64: 1, 128>}, {pipeline_mode = #tpu.pipeline_mode<synchronous>, transform_indices = @transform_5, window_bounds = array<i64: 128, 256>}, {pipeline_mode = #tpu.pipeline_mode<synchronous>, transform_indices = @transform_6, window_bounds = array<i64: 1, 256>}, {pipeline_mode = #tpu.pipeline_mode<synchronous>, transform_indices = @transform_7, window_bounds = array<i64: 128, 128>}, {pipeline_mode = #tpu.pipeline_mode<synchronous>, transform_indices = @transform_8, window_bounds = array<i64: 1, 128>}, {transform_indices = @transform_9, window_bounds = array<i64: 8, 128>}, {transform_indices = @transform_10, window_bounds = array<i64: 8, 128>}]} {
    %c0 = arith.constant 0 : index
    %c0_0 = arith.constant 0 : index
    %0 = vector.load %arg1[%c0, %c0_0] : memref<8x128xf32, #tpu.memory_space<vmem>>, vector<8x128xf32>
    %1 = arith.truncf %0 : vector<8x128xf32> to vector<8x128xbf16>
    %c0_1 = arith.constant 0 : index
    %c0_2 = arith.constant 0 : index
    %2 = vector.load %arg2[%c0_1, %c0_2] : memref<128x128xf32, #tpu.memory_space<vmem>>, vector<128x128xf32>
    %3 = arith.truncf %2 : vector<128x128xf32> to vector<128x128xbf16>
    %c0_3 = arith.constant 0 : index
    %c0_4 = arith.constant 0 : index
    %4 = vector.load %arg4[%c0_3, %c0_4] : memref<128x128xbf16, #tpu.memory_space<vmem>>, vector<128x128xbf16>
    %cst = arith.constant dense<0.000000e+00> : vector<8x128xf32>
    %5 = tpu.matmul %1, %4, %cst {dimension_numbers = #tpu.dot_dimension_numbers<[1], [0], [0], [1], [0, 0, 1, 1], [], []>} : vector<8x128xbf16>, vector<128x128xbf16>, vector<8x128xf32> -> vector<8x128xf32>
    %c0_5 = arith.constant 0 : index
    %c0_6 = arith.constant 0 : index
    %6 = vector.load %arg5[%c0_5, %c0_6] : memref<1x128xf32, #tpu.memory_space<vmem>>, vector<1x128xf32>
    %7 = vector.broadcast %6 : vector<1x128xf32> to vector<8x128xf32>
    %8 = arith.addf %5, %7 : vector<8x128xf32>
    %c0_7 = arith.constant 0 : index
    %c0_8 = arith.constant 0 : index
    %9 = vector.load %arg6[%c0_7, %c0_8] : memref<128x256xbf16, #tpu.memory_space<vmem>>, vector<128x256xbf16>
    %cst_9 = arith.constant dense<0.000000e+00> : vector<128x256xf32>
    %10 = tpu.matmul %3, %9, %cst_9 {dimension_numbers = #tpu.dot_dimension_numbers<[1], [0], [0], [1], [0, 0, 1, 1], [], []>} : vector<128x128xbf16>, vector<128x256xbf16>, vector<128x256xf32> -> vector<128x256xf32>
    %c0_10 = arith.constant 0 : index
    %c0_11 = arith.constant 0 : index
    %11 = vector.load %arg7[%c0_10, %c0_11] : memref<1x256xf32, #tpu.memory_space<vmem>>, vector<1x256xf32>
    %12 = vector.broadcast %11 : vector<1x256xf32> to vector<128x256xf32>
    %13 = arith.addf %10, %12 : vector<128x256xf32>
    %14 = vector.extract_strided_slice %13 {offsets = [0, 0], sizes = [128, 128], strides = [1, 1]} : vector<128x256xf32> to vector<128x128xf32>
    %15 = vector.extract_strided_slice %13 {offsets = [0, 128], sizes = [128, 128], strides = [1, 1]} : vector<128x256xf32> to vector<128x128xf32>
    %16 = arith.truncf %8 : vector<8x128xf32> to vector<8x128xbf16>
    %17 = arith.truncf %14 : vector<128x128xf32> to vector<128x128xbf16>
    %cst_12 = arith.constant dense<0.000000e+00> : vector<8x128xf32>
    %18 = tpu.matmul %16, %17, %cst_12 {dimension_numbers = #tpu.dot_dimension_numbers<[1], [1], [0], [0], [0, 0, 1, 0], [], []>} : vector<8x128xbf16>, vector<128x128xbf16>, vector<8x128xf32> -> vector<8x128xf32>
    %cst_13 = arith.constant 0.176776692 : f32
    %19 = vector.broadcast %cst_13 : f32 to vector<8x128xf32>
    %20 = arith.mulf %18, %19 : vector<8x128xf32>
    %c0_14 = arith.constant 0 : index
    %c0_15 = arith.constant 0 : index
    %21 = vector.load %arg3[%c0_14, %c0_15] : memref<8x128xf32, #tpu.memory_space<vmem>>, vector<8x128xf32>
    %cst_16 = arith.constant 5.000000e-01 : f32
    %22 = vector.broadcast %cst_16 : f32 to vector<8x128xf32>
    %23 = arith.cmpf ogt, %21, %22 : vector<8x128xf32>
    %cst_17 = arith.constant 0xFF800000 : f32
    %24 = vector.broadcast %cst_17 : f32 to vector<8x128xf32>
    %25 = arith.select %23, %20, %24 : vector<8x128xi1>, vector<8x128xf32>
    %cst_18 = arith.constant dense<0xFF800000> : vector<8xf32>
    %26 = vector.multi_reduction <maximumf>, %25, %cst_18 [1] : vector<8x128xf32> to vector<8xf32>
    %27 = vector.shape_cast %26 : vector<8xf32> to vector<8x1xf32>
    %28 = tpu.weird %27 : vector<8x1xf32> -> vector<8x1xi1>
    %cst_19 = arith.constant dense<true> : vector<8x1xi1>
    %29 = arith.xori %28, %cst_19 : vector<8x1xi1>
    %cst_20 = arith.constant 0.000000e+00 : f32
    %30 = vector.broadcast %cst_20 : f32 to vector<8x1xf32>
    %31 = arith.select %29, %27, %30 : vector<8x1xi1>, vector<8x1xf32>
    %32 = vector.broadcast %31 : vector<8x1xf32> to vector<8x128xf32>
    %33 = arith.subf %25, %32 : vector<8x128xf32>
    %34 = math.exp %33 : vector<8x128xf32>
    %cst_21 = arith.constant 0.000000e+00 : f32
    %35 = vector.broadcast %cst_21 : f32 to vector<8x128xf32>
    %36 = arith.select %23, %34, %35 : vector<8x128xi1>, vector<8x128xf32>
    %cst_22 = arith.constant dense<0.000000e+00> : vector<8xf32>
    %37 = vector.multi_reduction <add>, %36, %cst_22 [1] : vector<8x128xf32> to vector<8xf32>
    %38 = vector.shape_cast %37 : vector<8xf32> to vector<8x1xf32>
    %cst_23 = arith.constant 0.000000e+00 : f32
    %39 = vector.broadcast %cst_23 : f32 to vector<8x1xf32>
    %40 = arith.cmpf ogt, %38, %39 : vector<8x1xf32>
    %cst_24 = arith.constant 1.000000e+00 : f32
    %41 = vector.broadcast %cst_24 : f32 to vector<8x1xf32>
    %42 = arith.select %40, %38, %41 : vector<8x1xi1>, vector<8x1xf32>
    %43 = tpu.reciprocal %42 {approx = true} : vector<8x1xf32> -> vector<8x1xf32>
    %44 = vector.broadcast %43 : vector<8x1xf32> to vector<8x128xf32>
    %45 = arith.mulf %36, %44 : vector<8x128xf32>
    %cst_25 = arith.constant 0.000000e+00 : f32
    %46 = vector.shape_cast %40 : vector<8x1xi1> to vector<8x1xi1>
    %47 = vector.broadcast %46 : vector<8x1xi1> to vector<8x128xi1>
    %48 = vector.broadcast %cst_25 : f32 to vector<8x128xf32>
    %49 = arith.select %47, %45, %48 : vector<8x128xi1>, vector<8x128xf32>
    %c0_26 = arith.constant 0 : index
    %c0_27 = arith.constant 0 : index
    %50 = vector.load %arg11[%c0_26, %c0_27] : memref<8x128xf32, #tpu.memory_space<vmem>>, vector<8x128xf32>
    tpu.vector_store %arg11[%c0_26, %c0_27], %49 {strides = array<i32>} : memref<8x128xf32, #tpu.memory_space<vmem>>, vector<8x128xf32>,
    %51 = arith.truncf %49 : vector<8x128xf32> to vector<8x128xbf16>
    %52 = arith.truncf %15 : vector<128x128xf32> to vector<128x128xbf16>
    %cst_28 = arith.constant dense<0.000000e+00> : vector<8x128xf32>
    %53 = tpu.matmul %51, %52, %cst_28 {dimension_numbers = #tpu.dot_dimension_numbers<[1], [0], [0], [1], [0, 0, 1, 1], [], []>} : vector<8x128xbf16>, vector<128x128xbf16>, vector<8x128xf32> -> vector<8x128xf32>
    %54 = arith.truncf %53 : vector<8x128xf32> to vector<8x128xbf16>
    %c0_29 = arith.constant 0 : index
    %c0_30 = arith.constant 0 : index
    %55 = vector.load %arg8[%c0_29, %c0_30] : memref<128x128xbf16, #tpu.memory_space<vmem>>, vector<128x128xbf16>
    %cst_31 = arith.constant dense<0.000000e+00> : vector<8x128xf32>
    %56 = tpu.matmul %54, %55, %cst_31 {dimension_numbers = #tpu.dot_dimension_numbers<[1], [0], [0], [1], [0, 0, 1, 1], [], []>} : vector<8x128xbf16>, vector<128x128xbf16>, vector<8x128xf32> -> vector<8x128xf32>
    %c0_32 = arith.constant 0 : index
    %c0_33 = arith.constant 0 : index
    %57 = vector.load %arg9[%c0_32, %c0_33] : memref<1x128xf32, #tpu.memory_space<vmem>>, vector<1x128xf32>
    %58 = vector.broadcast %57 : vector<1x128xf32> to vector<8x128xf32>
    %59 = arith.addf %56, %58 : vector<8x128xf32>
    %c0_34 = arith.constant 0 : index
    %c0_35 = arith.constant 0 : index
    %60 = vector.load %arg10[%c0_34, %c0_35] : memref<8x128xf32, #tpu.memory_space<vmem>>, vector<8x128xf32>
    tpu.vector_store %arg10[%c0_34, %c0_35], %59 {strides = array<i32>} : memref<8x128xf32, #tpu.memory_space<vmem>>, vector<8x128xf32>,
    return
  }
  func.func @transform_0(%arg0: i32) -> (i32, i32) {
    %c0_i32 = arith.constant 0 : i32
    %c0_i32_0 = arith.constant 0 : i32
    return %arg0, %c0_i32 : i32, i32
  }
  func.func @transform_1(%arg0: i32) -> (i32, i32) {
    %c0_i32 = arith.constant 0 : i32
    %c0_i32_0 = arith.constant 0 : i32
    %c0_i32_1 = arith.constant 0 : i32
    return %c0_i32, %c0_i32_0 : i32, i32
  }
  func.func @transform_2(%arg0: i32) -> (i32, i32) {
    %c0_i32 = arith.constant 0 : i32
    %c0_i32_0 = arith.constant 0 : i32
    return %arg0, %c0_i32 : i32, i32
  }
  func.func @transform_3(%arg0: i32) -> (i32, i32) {
    %c0_i32 = arith.constant 0 : i32
    %c0_i32_0 = arith.constant 0 : i32
    %c0_i32_1 = arith.constant 0 : i32
    return %c0_i32, %c0_i32_0 : i32, i32
  }
  func.func @transform_4(%arg0: i32) -> (i32, i32) {
    %c0_i32 = arith.constant 0 : i32
    %c0_i32_0 = arith.constant 0 : i32
    %c0_i32_1 = arith.constant 0 : i32
    return %c0_i32, %c0_i32_0 : i32, i32
  }
  func.func @transform_5(%arg0: i32) -> (i32, i32) {
    %c0_i32 = arith.constant 0 : i32
    %c0_i32_0 = arith.constant 0 : i32
    %c0_i32_1 = arith.constant 0 : i32
    return %c0_i32, %c0_i32_0 : i32, i32
  }
  func.func @transform_6(%arg0: i32) -> (i32, i32) {
    %c0_i32 = arith.constant 0 : i32
    %c0_i32_0 = arith.constant 0 : i32
    %c0_i32_1 = arith.constant 0 : i32
    return %c0_i32, %c0_i32_0 : i32, i32
  }
  func.func @transform_7(%arg0: i32) -> (i32, i32) {
    %c0_i32 = arith.constant 0 : i32
    %c0_i32_0 = arith.constant 0 : i32
    %c0_i32_1 = arith.constant 0 : i32
    return %c0_i32, %c0_i32_0 : i32, i32
  }
  func.func @transform_8(%arg0: i32) -> (i32, i32) {
    %c0_i32 = arith.constant 0 : i32
    %c0_i32_0 = arith.constant 0 : i32
    %c0_i32_1 = arith.constant 0 : i32
    return %c0_i32, %c0_i32_0 : i32, i32
  }
  func.func @transform_9(%arg0: i32) -> (i32, i32) {
    %c0_i32 = arith.constant 0 : i32
    %c0_i32_0 = arith.constant 0 : i32
    return %arg0, %c0_i32 : i32, i32
  }
  func.func @transform_10(%arg0: i32) -> (i32, i32) {
    %c0_i32 = arith.constant 0 : i32
    %c0_i32_0 = arith.constant 0 : i32
    return %arg0, %c0_i32 : i32, i32
  }
}

</mosaic_0001>

<llo_original>
// kernel: tpu_custom_call.1
$region0: #{tpu_custom_call.1}
  #allocation0 [shape = 'u32[]', space=smem, size = 0x4, offset = 0x4, fixed_abs, tag = 'smem constant byte address 0x4 - core index']
  #allocation1 [shape = 'u32[72,128]{1,0:T(1,128)}', space=vmem, size = 0x9000, scoped, tag = 'internal scratch']
  %s0 = inlined_call_operand.hbm [shape: f32[8,128], index: 0, kind: input, shape index: {}]
  %s1 = inlined_call_operand.hbm [shape: f32[128,128], index: 1, kind: input, shape index: {}]
  %s2 = inlined_call_operand.hbm [shape: f32[8,128], index: 2, kind: input, shape index: {}]
  %s3 = inlined_call_operand.hbm [shape: bf16[128,128], index: 3, kind: input, shape index: {}]
  %s4 = inlined_call_operand.vmem [shape: f32[1,128], index: 4, kind: input, shape index: {}]
  %s5 = inlined_call_operand.hbm [shape: bf16[128,256], index: 5, kind: input, shape index: {}]
  %s6 = inlined_call_operand.vmem [shape: f32[1,256], index: 6, kind: input, shape index: {}]
  %s7 = inlined_call_operand.hbm [shape: bf16[128,128], index: 7, kind: input, shape index: {}]
  %s8 = inlined_call_operand.vmem [shape: f32[1,128], index: 8, kind: input, shape index: {}]
  %s9 = inlined_call_operand.hbm [shape: f32[8,128], index: 9, kind: output, shape index: {0}]
  %s10 = inlined_call_operand.hbm [shape: f32[8,128], index: 10, kind: output, shape index: {1}]
  %11 = xla_tuple %s9, %s10
  %s12 = sld [smem:[#allocation0]]
  $region78: #{tpu_custom_call.1} parent=0
    _
  %s14 = ssub.s32 1, %s12
  %s15 = scalar_select 0, %s14, %s12
  $region1: #{tpu_custom_call.1} parent=0
    #allocation2 [shape = 'u8[4096]{0}', space=vmem, size = 0x1000, scoped, tag = 'input window, operand 0, single buffered']
    #allocation3 [shape = 's32[1]{0}', space=sflag, size = 0x4, scoped, tag = 'scoped memory for tpu_custom_call.1']
    #allocation4 [shape = 's32[1]{0}', space=sflag, size = 0x4, scoped, tag = 'scoped memory for tpu_custom_call.1']
    #allocation5 [shape = 'u8[65536]{0}', space=vmem, size = 0x10000, scoped, tag = 'input window, operand 1, single buffered']
    #allocation6 [shape = 's32[1]{0}', space=sflag, size = 0x4, scoped, tag = 'scoped memory for tpu_custom_call.1']
    #allocation7 [shape = 'u8[4096]{0}', space=vmem, size = 0x1000, scoped, tag = 'input window, operand 2, single buffered']
    #allocation8 [shape = 'u8[32768]{0}', space=vmem, size = 0x8000, scoped, tag = 'input window, operand 3, single buffered']
    #allocation9 [shape = 's32[1]{0}', space=sflag, size = 0x4, scoped, tag = 'scoped memory for tpu_custom_call.1']
    #allocation10 [shape = 'u8[65536]{0}', space=vmem, size = 0x10000, scoped, tag = 'input window, operand 5, single buffered']
    #allocation11 [shape = 'u8[32768]{0}', space=vmem, size = 0x8000, scoped, tag = 'input window, operand 7, single buffered']
    #allocation12 [shape = 's32[1]{0}', space=sflag, size = 0x4, scoped, tag = 'scoped memory for tpu_custom_call.1']
    #allocation13 [shape = 'u8[4096]{0}', space=vmem, size = 0x1000, scoped, tag = 'output window, operand 0, single buffered']
    #allocation14 [shape = 'u8[4096]{0}', space=vmem, size = 0x1000, scoped, tag = 'output window, operand 1, single buffered']
    #allocation15 [shape = 's32[1]{0}', space=sflag, size = 0x4, scoped, tag = 'scoped memory for tpu_custom_call.1']
    %16 = vsyncpa [#allocation3], 0
    %17 = vsyncpa [#allocation6], 0
    %18 = vsyncpa [#allocation9], 0
    %19 = vsyncpa [#allocation12], 0
    %20 = vsyncpa [#allocation4], 0
    %21 = vsyncpa [#allocation15], 0
    // Predicated region
    $region2: #{tpu_custom_call.1} parent=1 // pred_check
      _
    $region3: #{tpu_custom_call.1} parent=1 // pred_check_branch
      %23 = sbr.rel (0) target = $region5
    $region4: #{tpu_custom_call.1} parent=1 // pred_region
      %25 = vsyncadd [#allocation3], 0
      %s27 = sshll.u32 %s0, 4
      %s28 = int_to_ptr.hbm [resolvable:$true] %s27
      %s29 = sshll.u32 [#allocation2], 4
      %s30 = int_to_ptr.vmem [resolvable:$true] %s29
      %32 = dma.hbm_to_vmem [thread:$0]  %s28, 128, %s30, [#allocation3]
    $region5: #{tpu_custom_call.1} parent=1 // pred_fallthru
      _
    // Predicated region
    $region6: #{tpu_custom_call.1} parent=1 // pred_check
      _
    $region7: #{tpu_custom_call.1} parent=1 // pred_check_branch
      %34 = sbr.rel (0) target = $region9
    $region8: #{tpu_custom_call.1} parent=1 // pred_region
      %36 = vsyncadd [#allocation6], 0
      %s37 = sshll.u32 %s1, 4
      %s38 = int_to_ptr.hbm [resolvable:$true] %s37
      %s39 = sshll.u32 [#allocation5], 4
      %s40 = int_to_ptr.vmem [resolvable:$true] %s39
      %45 = dma.hbm_to_vmem [thread:$0]  %s38, 2048, %s40, [#allocation6], 128, 128, 8
    $region9: #{tpu_custom_call.1} parent=1 // pred_fallthru
      _
    // Predicated region
    $region10: #{tpu_custom_call.1} parent=1 // pred_check
      _
    $region11: #{tpu_custom_call.1} parent=1 // pred_check_branch
      %47 = sbr.rel (0) target = $region13
    $region12: #{tpu_custom_call.1} parent=1 // pred_region
      %49 = vsyncadd [#allocation6], 0
      %s51 = sshll.u32 %s2, 4
      %s52 = int_to_ptr.hbm [resolvable:$true] %s51
      %s53 = sshll.u32 [#allocation7], 4
      %s54 = int_to_ptr.vmem [resolvable:$true] %s53
      %56 = dma.hbm_to_vmem [thread:$0]  %s52, 128, %s54, [#allocation6]
    $region13: #{tpu_custom_call.1} parent=1 // pred_fallthru
      _
    // Predicated region
    $region14: #{tpu_custom_call.1} parent=1 // pred_check
      _
    $region15: #{tpu_custom_call.1} parent=1 // pred_check_branch
      %58 = sbr.rel (0) target = $region17
    $region16: #{tpu_custom_call.1} parent=1 // pred_region
      %60 = vsyncadd [#allocation9], 0
      %s61 = sshll.u32 %s3, 4
      %s62 = int_to_ptr.hbm [resolvable:$true] %s61
      %s63 = sshll.u32 [#allocation8], 4
      %s64 = int_to_ptr.vmem [resolvable:$true] %s63
      %69 = dma.hbm_to_vmem [thread:$0]  %s62, 1024, %s64, [#allocation9], 64, 64, 4
    $region17: #{tpu_custom_call.1} parent=1 // pred_fallthru
      _
    // Predicated region
    $region18: #{tpu_custom_call.1} parent=1 // pred_check
      _
    $region19: #{tpu_custom_call.1} parent=1 // pred_check_branch
      %71 = sbr.rel (0) target = $region21
    $region20: #{tpu_custom_call.1} parent=1 // pred_region
      _
    $region21: #{tpu_custom_call.1} parent=1 // pred_fallthru
      _
    // Predicated region
    $region22: #{tpu_custom_call.1} parent=1 // pred_check
      _
    $region23: #{tpu_custom_call.1} parent=1 // pred_check_branch
      %73 = sbr.rel (0) target = $region25
    $region24: #{tpu_custom_call.1} parent=1 // pred_region
      %75 = vsyncadd [#allocation9], 0
      %s76 = sshll.u32 %s5, 4
      %s77 = int_to_ptr.hbm [resolvable:$true] %s76
      %s78 = sshll.u32 [#allocation10], 4
      %s79 = int_to_ptr.vmem [resolvable:$true] %s78
      %84 = dma.hbm_to_vmem [thread:$0]  %s77, 2048, %s79, [#allocation9], 128, 128, 8
    $region25: #{tpu_custom_call.1} parent=1 // pred_fallthru
      _
    // Predicated region
    $region26: #{tpu_custom_call.1} parent=1 // pred_check
      _
    $region27: #{tpu_custom_call.1} parent=1 // pred_check_branch
      %86 = sbr.rel (0) target = $region29
    $region28: #{tpu_custom_call.1} parent=1 // pred_region
      _
    $region29: #{tpu_custom_call.1} parent=1 // pred_fallthru
      _
    // Predicated region
    $region30: #{tpu_custom_call.1} parent=1 // pred_check
      _
    $region31: #{tpu_custom_call.1} parent=1 // pred_check_branch
      %88 = sbr.rel (0) target = $region33
    $region32: #{tpu_custom_call.1} parent=1 // pred_region
      %90 = vsyncadd [#allocation12], 0
      %s91 = sshll.u32 %s7, 4
      %s92 = int_to_ptr.hbm [resolvable:$true] %s91
      %s93 = sshll.u32 [#allocation11], 4
      %s94 = int_to_ptr.vmem [resolvable:$true] %s93
      %99 = dma.hbm_to_vmem [thread:$0]  %s92, 1024, %s94, [#allocation12], 64, 64, 4
    $region33: #{tpu_custom_call.1} parent=1 // pred_fallthru
      _
    // Predicated region
    $region34: #{tpu_custom_call.1} parent=1 // pred_check
      _
    $region35: #{tpu_custom_call.1} parent=1 // pred_check_branch
      %101 = sbr.rel (0) target = $region37
    $region36: #{tpu_custom_call.1} parent=1 // pred_region
      _
    $region37: #{tpu_custom_call.1} parent=1 // pred_fallthru
      _
    // Predicated region
    $region38: #{tpu_custom_call.1} parent=1 // pred_check
      _
    $region39: #{tpu_custom_call.1} parent=1 // pred_check_branch
      %103 = sbr.rel (0) target = $region41
    $region40: #{tpu_custom_call.1} parent=1 // pred_region
      %105 = dma.done [#allocation3], 128
    $region41: #{tpu_custom_call.1} parent=1 // pred_fallthru
      _
    // Predicated region
    $region42: #{tpu_custom_call.1} parent=1 // pred_check
      _
    $region43: #{tpu_custom_call.1} parent=1 // pred_check_branch
      %107 = sbr.rel (0) target = $region45
    $region44: #{tpu_custom_call.1} parent=1 // pred_region
      %109 = dma.done [#allocation6], 2048
    $region45: #{tpu_custom_call.1} parent=1 // pred_fallthru
      _
    // Predicated region
    $region46: #{tpu_custom_call.1} parent=1 // pred_check
      _
    $region47: #{tpu_custom_call.1} parent=1 // pred_check_branch
      %111 = sbr.rel (0) target = $region49
    $region48: #{tpu_custom_call.1} parent=1 // pred_region
      %113 = dma.done [#allocation6], 128
    $region49: #{tpu_custom_call.1} parent=1 // pred_fallthru
      _
    // Predicated region
    $region50: #{tpu_custom_call.1} parent=1 // pred_check
      _
    $region51: #{tpu_custom_call.1} parent=1 // pred_check_branch
      %115 = sbr.rel (0) target = $region53
    $region52: #{tpu_custom_call.1} parent=1 // pred_region
      %117 = dma.done [#allocation9], 1024
    $region53: #{tpu_custom_call.1} parent=1 // pred_fallthru
      _
    // Predicated region
    $region54: #{tpu_custom_call.1} parent=1 // pred_check
      _
    $region55: #{tpu_custom_call.1} parent=1 // pred_check_branch
      %119 = sbr.rel (0) target = $region57
    $region56: #{tpu_custom_call.1} parent=1 // pred_region
      %121 = dma.done [#allocation9], 2048
    $region57: #{tpu_custom_call.1} parent=1 // pred_fallthru
      _
    // Predicated region
    $region58: #{tpu_custom_call.1} parent=1 // pred_check
      _
    $region59: #{tpu_custom_call.1} parent=1 // pred_check_branch
      %123 = sbr.rel (0) target = $region61
    $region60: #{tpu_custom_call.1} parent=1 // pred_region
      %125 = dma.done [#allocation12], 1024
    $region61: #{tpu_custom_call.1} parent=1 // pred_fallthru
      _
    %v126 = vld [vmem:[#allocation2] sm:$0xff]
    %v127 = vpack.c.bf16 %v126, %v126
    %v128 = vld [vmem:[#allocation5] sm:$0xff]
    %v129 = vld [vmem:[#allocation5 + $0x8] sm:$0xff]
    %v130 = vld [vmem:[#allocation5 + $0x10] sm:$0xff]
    %v131 = vld [vmem:[#allocation5 + $0x18] sm:$0xff]
    %v132 = vld [vmem:[#allocation5 + $0x20] sm:$0xff]
    %v133 = vld [vmem:[#allocation5 + $0x28] sm:$0xff]
    %v134 = vld [vmem:[#allocation5 + $0x30] sm:$0xff]
    %v135 = vld [vmem:[#allocation5 + $0x38] sm:$0xff]
    %v136 = vld [vmem:[#allocation5 + $0x40] sm:$0xff]
    %v137 = vld [vmem:[#allocation5 + $0x48] sm:$0xff]
    %v138 = vld [vmem:[#allocation5 + $0x50] sm:$0xff]
    %v139 = vld [vmem:[#allocation5 + $0x58] sm:$0xff]
    %v140 = vld [vmem:[#allocation5 + $0x60] sm:$0xff]
    %v141 = vld [vmem:[#allocation5 + $0x68] sm:$0xff]
    %v142 = vld [vmem:[#allocation5 + $0x70] sm:$0xff]
    %v143 = vld [vmem:[#allocation5 + $0x78] sm:$0xff]
    %v144 = vpack.c.bf16 %v129, %v128
    %v145 = vpack.c.bf16 %v131, %v130
    %v146 = vpack.c.bf16 %v133, %v132
    %v147 = vpack.c.bf16 %v135, %v134
    %v148 = vpack.c.bf16 %v137, %v136
    %v149 = vpack.c.bf16 %v139, %v138
    %v150 = vpack.c.bf16 %v141, %v140
    %v151 = vpack.c.bf16 %v143, %v142
    %v152 = vld [vmem:[#allocation8] sm:$0xf]
    %v153 = vld [vmem:[#allocation8 + $0x4] sm:$0xf]
    %v154 = vld [vmem:[#allocation8 + $0x8] sm:$0xf]
    %v155 = vld [vmem:[#allocation8 + $0xc] sm:$0xf]
    %v156 = vld [vmem:[#allocation8 + $0x10] sm:$0xf]
    %v157 = vld [vmem:[#allocation8 + $0x14] sm:$0xf]
    %v158 = vld [vmem:[#allocation8 + $0x18] sm:$0xf]
    %v159 = vld [vmem:[#allocation8 + $0x1c] sm:$0xf]
    %v160 = vld [vmem:[#allocation8 + $0x20] sm:$0xf]
    %v161 = vld [vmem:[#allocation8 + $0x24] sm:$0xf]
    %v162 = vld [vmem:[#allocation8 + $0x28] sm:$0xf]
    %v163 = vld [vmem:[#allocation8 + $0x2c] sm:$0xf]
    %v164 = vld [vmem:[#allocation8 + $0x30] sm:$0xf]
    %v165 = vld [vmem:[#allocation8 + $0x34] sm:$0xf]
    %v166 = vld [vmem:[#allocation8 + $0x38] sm:$0xf]
    %v167 = vld [vmem:[#allocation8 + $0x3c] sm:$0xf]
    %v168 = vld [vmem:[%s4] sm:$0x1]
    %v170 = vperm.slane %v168, 0
    %v188 = vunpack.c.l.b16 %v152
    %v189 = vunpack.c.l.b16 %v153
    %v190 = vunpack.c.l.b16 %v154
    %v191 = vunpack.c.l.b16 %v155
    %v192 = vunpack.c.l.b16 %v156
    %v193 = vunpack.c.l.b16 %v157
    %v194 = vunpack.c.l.b16 %v158
    %v195 = vunpack.c.l.b16 %v159
    %v196 = vunpack.c.l.b16 %v160
    %v197 = vunpack.c.l.b16 %v161
    %v198 = vunpack.c.l.b16 %v162
    %v199 = vunpack.c.l.b16 %v163
    %v200 = vunpack.c.l.b16 %v164
    %v201 = vunpack.c.l.b16 %v165
    %v202 = vunpack.c.l.b16 %v166
    %v203 = vunpack.c.l.b16 %v167
    %v204 = vpack.c.b16 %v189, %v188
    %v205 = vpack.c.b16 %v191, %v190
    %v206 = vpack.c.b16 %v193, %v192
    %v207 = vpack.c.b16 %v195, %v194
    %v208 = vpack.c.b16 %v197, %v196
    %v209 = vpack.c.b16 %v199, %v198
    %v210 = vpack.c.b16 %v201, %v200
    %v211 = vpack.c.b16 %v203, %v202
    %220 = vmatpush.bf16.msra.mxu0 %v211
    %221 = vmatpush.bf16.msra.mxu0 %v210
    %222 = vmatpush.bf16.msra.mxu0 %v209
    %223 = vmatpush.bf16.msra.mxu0 %v208
    %224 = vmatpush.bf16.msra.mxu0 %v207
    %225 = vmatpush.bf16.msra.mxu0 %v206
    %226 = vmatpush.bf16.msra.mxu0 %v205
    %227 = vmatpush.bf16.msra.mxu0 %v204
    %228 = vmatmul.bf16.gmra.mxu0 %v127
    %v229 = vpop.f32.mrf.mxu0
    %v230 = vadd.f32 %v170, %v229
    %v231 = vpop.f32.mrf.mxu0
    %232 = vdwg.mxu0
    %v233 = vld [vmem:[#allocation10] sm:$0xff]
    %v234 = vld [vmem:[#allocation10 + $0x8] sm:$0xff]
    %v235 = vld [vmem:[#allocation10 + $0x10] sm:$0xff]
    %v236 = vld [vmem:[#allocation10 + $0x18] sm:$0xff]
    %v237 = vld [vmem:[#allocation10 + $0x20] sm:$0xff]
    %v238 = vld [vmem:[#allocation10 + $0x28] sm:$0xff]
    %v239 = vld [vmem:[#allocation10 + $0x30] sm:$0xff]
    %v240 = vld [vmem:[#allocation10 + $0x38] sm:$0xff]
    %v241 = vld [vmem:[#allocation10 + $0x40] sm:$0xff]
    %v242 = vld [vmem:[#allocation10 + $0x48] sm:$0xff]
    %v243 = vld [vmem:[#allocation10 + $0x50] sm:$0xff]
    %v244 = vld [vmem:[#allocation10 + $0x58] sm:$0xff]
    %v245 = vld [vmem:[#allocation10 + $0x60] sm:$0xff]
    %v246 = vld [vmem:[#allocation10 + $0x68] sm:$0xff]
    %v247 = vld [vmem:[#allocation10 + $0x70] sm:$0xff]
    %v248 = vld [vmem:[#allocation10 + $0x78] sm:$0xff]
    %v249 = vld [vmem:[%s6] sm:$0x3]
    %v251 = vperm.slane %v249, 0
    %v252 = vperm.slane %v249, 1
    %v271 = vunpack.c.l.b16 %v233
    %v272 = vunpack.c.h.b16 %v233
    %v273 = vunpack.c.l.b16 %v234
    %v274 = vunpack.c.h.b16 %v234
    %v275 = vunpack.c.l.b16 %v235
    %v276 = vunpack.c.h.b16 %v235
    %v277 = vunpack.c.l.b16 %v236
    %v278 = vunpack.c.h.b16 %v236
    %v279 = vunpack.c.l.b16 %v237
    %v280 = vunpack.c.h.b16 %v237
    %v281 = vunpack.c.l.b16 %v238
    %v282 = vunpack.c.h.b16 %v238
    %v283 = vunpack.c.l.b16 %v239
    %v284 = vunpack.c.h.b16 %v239
    %v285 = vunpack.c.l.b16 %v240
    %v286 = vunpack.c.h.b16 %v240
    %v287 = vunpack.c.l.b16 %v241
    %v288 = vunpack.c.h.b16 %v241
    %v289 = vunpack.c.l.b16 %v242
    %v290 = vunpack.c.h.b16 %v242
    %v291 = vunpack.c.l.b16 %v243
    %v292 = vunpack.c.h.b16 %v243
    %v293 = vunpack.c.l.b16 %v244
    %v294 = vunpack.c.h.b16 %v244
    %v295 = vunpack.c.l.b16 %v245
    %v296 = vunpack.c.h.b16 %v245
    %v297 = vunpack.c.l.b16 %v246
    %v298 = vunpack.c.h.b16 %v246
    %v299 = vunpack.c.l.b16 %v247
    %v300 = vunpack.c.h.b16 %v247
    %v301 = vunpack.c.l.b16 %v248
    %v302 = vunpack.c.h.b16 %v248
    %v303 = vpack.c.b16 %v273, %v271
    %v304 = vpack.c.b16 %v274, %v272
    %v305 = vpack.c.b16 %v277, %v275
    %v306 = vpack.c.b16 %v278, %v276
    %v307 = vpack.c.b16 %v281, %v279
    %v308 = vpack.c.b16 %v282, %v280
    %v309 = vpack.c.b16 %v285, %v283
    %v310 = vpack.c.b16 %v286, %v284
    %v311 = vpack.c.b16 %v289, %v287
    %v312 = vpack.c.b16 %v290, %v288
    %v313 = vpack.c.b16 %v293, %v291
    %v314 = vpack.c.b16 %v294, %v292
    %v315 = vpack.c.b16 %v297, %v295
    %v316 = vpack.c.b16 %v298, %v296
    %v317 = vpack.c.b16 %v301, %v299
    %v318 = vpack.c.b16 %v302, %v300
    %335 = vmatpush.bf16.msra.mxu0 %v317
    %336 = vmatpush.bf16.msra.mxu0 %v315
    %337 = vmatpush.bf16.msra.mxu0 %v313
    %338 = vmatpush.bf16.msra.mxu0 %v311
    %339 = vmatpush.bf16.msra.mxu0 %v309
    %340 = vmatpush.bf16.msra.mxu0 %v307
    %341 = vmatpush.bf16.msra.mxu0 %v305
    %342 = vmatpush.bf16.msra.mxu0 %v303
    %343 = vmatmul.bf16.gmra.mxu0 %v144
    %v344 = vpop.f32.mrf.mxu0
    %v345 = vadd.f32 %v251, %v344
    %v346 = vpop.f32.mrf.mxu0
    %v347 = vadd.f32 %v251, %v346
    %348 = vmatmul.bf16.gmra.mxu0 %v145
    %v349 = vpop.f32.mrf.mxu0
    %v350 = vadd.f32 %v251, %v349
    %v351 = vpop.f32.mrf.mxu0
    %v352 = vadd.f32 %v251, %v351
    %353 = vmatmul.bf16.gmra.mxu0 %v146
    %v354 = vpop.f32.mrf.mxu0
    %v355 = vadd.f32 %v251, %v354
    %v356 = vpop.f32.mrf.mxu0
    %v357 = vadd.f32 %v251, %v356
    %358 = vmatmul.bf16.gmra.mxu0 %v147
    %v359 = vpop.f32.mrf.mxu0
    %v360 = vadd.f32 %v251, %v359
    %v361 = vpop.f32.mrf.mxu0
    %v362 = vadd.f32 %v251, %v361
    %363 = vmatmul.bf16.gmra.mxu0 %v148
    %v364 = vpop.f32.mrf.mxu0
    %v365 = vadd.f32 %v251, %v364
    %v366 = vpop.f32.mrf.mxu0
    %v367 = vadd.f32 %v251, %v366
    %368 = vmatmul.bf16.gmra.mxu0 %v149
    %v369 = vpop.f32.mrf.mxu0
    %v370 = vadd.f32 %v251, %v369
    %v371 = vpop.f32.mrf.mxu0
    %v372 = vadd.f32 %v251, %v371
    %373 = vmatmul.bf16.gmra.mxu0 %v150
    %v374 = vpop.f32.mrf.mxu0
    %v375 = vadd.f32 %v251, %v374
    %v376 = vpop.f32.mrf.mxu0
    %v377 = vadd.f32 %v251, %v376
    %378 = vmatmul.bf16.gmra.mxu0 %v151
    %v379 = vpop.f32.mrf.mxu0
    %v380 = vadd.f32 %v251, %v379
    %v381 = vpop.f32.mrf.mxu0
    %v382 = vadd.f32 %v251, %v381
    %383 = vdwg.mxu0
    %384 = vmatpush.bf16.msra.mxu0 %v318
    %385 = vmatpush.bf16.msra.mxu0 %v316
    %386 = vmatpush.bf16.msra.mxu0 %v314
    %387 = vmatpush.bf16.msra.mxu0 %v312
    %388 = vmatpush.bf16.msra.mxu0 %v310
    %389 = vmatpush.bf16.msra.mxu0 %v308
    %390 = vmatpush.bf16.msra.mxu0 %v306
    %391 = vmatpush.bf16.msra.mxu0 %v304
    %392 = vmatmul.bf16.gmra.mxu0 %v144
    %v393 = vpop.f32.mrf.mxu0
    %v394 = vadd.f32 %v252, %v393
    %v395 = vpop.f32.mrf.mxu0
    %v396 = vadd.f32 %v252, %v395
    %397 = vmatmul.bf16.gmra.mxu0 %v145
    %v398 = vpop.f32.mrf.mxu0
    %v399 = vadd.f32 %v252, %v398
    %v400 = vpop.f32.mrf.mxu0
    %v401 = vadd.f32 %v252, %v400
    %402 = vmatmul.bf16.gmra.mxu0 %v146
    %v403 = vpop.f32.mrf.mxu0
    %v404 = vadd.f32 %v252, %v403
    %v405 = vpop.f32.mrf.mxu0
    %v406 = vadd.f32 %v252, %v405
    %407 = vmatmul.bf16.gmra.mxu0 %v147
    %v408 = vpop.f32.mrf.mxu0
    %v409 = vadd.f32 %v252, %v408
    %v410 = vpop.f32.mrf.mxu0
    %v411 = vadd.f32 %v252, %v410
    %412 = vmatmul.bf16.gmra.mxu0 %v148
    %v413 = vpop.f32.mrf.mxu0
    %v414 = vadd.f32 %v252, %v413
    %v415 = vpop.f32.mrf.mxu0
    %v416 = vadd.f32 %v252, %v415
    %417 = vmatmul.bf16.gmra.mxu0 %v149
    %v418 = vpop.f32.mrf.mxu0
    %v419 = vadd.f32 %v252, %v418
    %v420 = vpop.f32.mrf.mxu0
    %v421 = vadd.f32 %v252, %v420
    %422 = vmatmul.bf16.gmra.mxu0 %v150
    %v423 = vpop.f32.mrf.mxu0
    %v424 = vadd.f32 %v252, %v423
    %v425 = vpop.f32.mrf.mxu0
    %v426 = vadd.f32 %v252, %v425
    %427 = vmatmul.bf16.gmra.mxu0 %v151
    %v428 = vpop.f32.mrf.mxu0
    %v429 = vadd.f32 %v252, %v428
    %v430 = vpop.f32.mrf.mxu0
    %v431 = vadd.f32 %v252, %v430
    %432 = vdwg.mxu0
    %v433 = vpack.c.bf16 %v230, %v230
    %v434 = vpack.c.bf16 %v347, %v345
    %v435 = vpack.c.bf16 %v352, %v350
    %v436 = vpack.c.bf16 %v357, %v355
    %v437 = vpack.c.bf16 %v362, %v360
    %v438 = vpack.c.bf16 %v367, %v365
    %v439 = vpack.c.bf16 %v372, %v370
    %v440 = vpack.c.bf16 %v377, %v375
    %v441 = vpack.c.bf16 %v382, %v380
    %442 = vmatpush.bf16.xpose.msra.mxu0 %v441
    %443 = vmatpush.bf16.xpose.msra.mxu0 %v440
    %444 = vmatpush.bf16.xpose.msra.mxu0 %v439
    %445 = vmatpush.bf16.xpose.msra.mxu0 %v438
    %446 = vmatpush.bf16.xpose.msra.mxu0 %v437
    %447 = vmatpush.bf16.xpose.msra.mxu0 %v436
    %448 = vmatpush.bf16.xpose.msra.mxu0 %v435
    %449 = vmatpush.bf16.xpose.msra.mxu0 %v434
    %450 = vmatmul.bf16.gmra.mxu0 %v433
    %v451 = vpop.f32.mrf.mxu0
    %v452 = vadd.f32 0.0, %v451
    %v453 = vpop.f32.mrf.mxu0
    %454 = vdwg.mxu0
    %v455 = vmul.f32 %v452, 0.17677669
    %v456 = vld [vmem:[#allocation7] sm:$0xff]
    %vm457 = vcmp.gt.f32.partialorder %v456, 0.5
    %v458 = vsel %vm457, %v455, -inf
    %459 = vmax.xlane.f32.xlu0 %v458
    %v460 = vpop.xlane.xlu0 %459
    %vm461 = vweird.f32 %v460
    %vm462 = vmxor %vm461, 1
    %v463 = vsel %vm462, %v460, 0.0
    %v464 = vsub.f32 %v458, %v463
    %v465 = vmul.f32 %v464, 1.442695
    %v466 = vpow.pop %v465
    %v467 = vsel %vm457, %v466, 0.0
    %468 = vadd.xlane.f32.xlu0 %v467
    %v469 = vpop.xlane.xlu0 %468
    %vm470 = vcmp.gt.f32.partialorder %v469, 0.0
    %v471 = vsel %vm470, %v469, 1.0
    %v472 = vrcp.pop %v471
    %v473 = vmul.f32 %v467, %v472
    %v474 = vsel %vm470, 1, 0
    %vm475 = vcmp.eq.s32.totalorder %v474, 1
    %v476 = vsel %vm475, %v473, 0.0
    %477 = vst [vmem:[#allocation14] sm:$0xff] %v476
    %v478 = vpack.c.bf16 %v476, %v476
    %v479 = vpack.c.bf16 %v396, %v394
    %v480 = vpack.c.bf16 %v401, %v399
    %v481 = vpack.c.bf16 %v406, %v404
    %v482 = vpack.c.bf16 %v411, %v409
    %v483 = vpack.c.bf16 %v416, %v414
    %v484 = vpack.c.bf16 %v421, %v419
    %v485 = vpack.c.bf16 %v426, %v424
    %v486 = vpack.c.bf16 %v431, %v429
    %487 = vmatpush.bf16.msra.mxu0 %v486
    %488 = vmatpush.bf16.msra.mxu0 %v485
    %489 = vmatpush.bf16.msra.mxu0 %v484
    %490 = vmatpush.bf16.msra.mxu0 %v483
    %491 = vmatpush.bf16.msra.mxu0 %v482
    %492 = vmatpush.bf16.msra.mxu0 %v481
    %493 = vmatpush.bf16.msra.mxu0 %v480
    %494 = vmatpush.bf16.msra.mxu0 %v479
    %495 = vmatmul.bf16.gmra.mxu0 %v478
    %v496 = vpop.f32.mrf.mxu0
    %v497 = vadd.f32 0.0, %v496
    %v498 = vpop.f32.mrf.mxu0
    %499 = vdwg.mxu0
    %v500 = vpack.c.bf16 %v497, %v497
    %v501 = vld [vmem:[#allocation11] sm:$0xf]
    %v502 = vld [vmem:[#allocation11 + $0x4] sm:$0xf]
    %v503 = vld [vmem:[#allocation11 + $0x8] sm:$0xf]
    %v504 = vld [vmem:[#allocation11 + $0xc] sm:$0xf]
    %v505 = vld [vmem:[#allocation11 + $0x10] sm:$0xf]
    %v506 = vld [vmem:[#allocation11 + $0x14] sm:$0xf]
    %v507 = vld [vmem:[#allocation11 + $0x18] sm:$0xf]
    %v508 = vld [vmem:[#allocation11 + $0x1c] sm:$0xf]
    %v509 = vld [vmem:[#allocation11 + $0x20] sm:$0xf]
    %v510 = vld [vmem:[#allocation11 + $0x24] sm:$0xf]
    %v511 = vld [vmem:[#allocation11 + $0x28] sm:$0xf]
    %v512 = vld [vmem:[#allocation11 + $0x2c] sm:$0xf]
    %v513 = vld [vmem:[#allocation11 + $0x30] sm:$0xf]
    %v514 = vld [vmem:[#allocation11 + $0x34] sm:$0xf]
    %v515 = vld [vmem:[#allocation11 + $0x38] sm:$0xf]
    %v516 = vld [vmem:[#allocation11 + $0x3c] sm:$0xf]
    %v517 = vld [vmem:[%s8] sm:$0x1]
    %v519 = vperm.slane %v517, 0
    %v537 = vunpack.c.l.b16 %v501
    %v538 = vunpack.c.l.b16 %v502
    %v539 = vunpack.c.l.b16 %v503
    %v540 = vunpack.c.l.b16 %v504
    %v541 = vunpack.c.l.b16 %v505
    %v542 = vunpack.c.l.b16 %v506
    %v543 = vunpack.c.l.b16 %v507
    %v544 = vunpack.c.l.b16 %v508
    %v545 = vunpack.c.l.b16 %v509
    %v546 = vunpack.c.l.b16 %v510
    %v547 = vunpack.c.l.b16 %v511
    %v548 = vunpack.c.l.b16 %v512
    %v549 = vunpack.c.l.b16 %v513
    %v550 = vunpack.c.l.b16 %v514
    %v551 = vunpack.c.l.b16 %v515
    %v552 = vunpack.c.l.b16 %v516
    %v553 = vpack.c.b16 %v538, %v537
    %v554 = vpack.c.b16 %v540, %v539
    %v555 = vpack.c.b16 %v542, %v541
    %v556 = vpack.c.b16 %v544, %v543
    %v557 = vpack.c.b16 %v546, %v545
    %v558 = vpack.c.b16 %v548, %v547
    %v559 = vpack.c.b16 %v550, %v549
    %v560 = vpack.c.b16 %v552, %v551
    %569 = vmatpush.bf16.msra.mxu0 %v560
    %570 = vmatpush.bf16.msra.mxu0 %v559
    %571 = vmatpush.bf16.msra.mxu0 %v558
    %572 = vmatpush.bf16.msra.mxu0 %v557
    %573 = vmatpush.bf16.msra.mxu0 %v556
    %574 = vmatpush.bf16.msra.mxu0 %v555
    %575 = vmatpush.bf16.msra.mxu0 %v554
    %576 = vmatpush.bf16.msra.mxu0 %v553
    %577 = vmatmul.bf16.gmra.mxu0 %v500
    %v578 = vpop.f32.mrf.mxu0
    %v579 = vadd.f32 %v519, %v578
    %v580 = vpop.f32.mrf.mxu0
    %581 = vdwg.mxu0
    %582 = vst [vmem:[#allocation13] sm:$0xff] %v579
    // Predicated region
    $region62: #{tpu_custom_call.1} parent=1 // pred_check
      _
    $region63: #{tpu_custom_call.1} parent=1 // pred_check_branch
      %584 = sbr.rel (0) target = $region65
    $region64: #{tpu_custom_call.1} parent=1 // pred_region
      %586 = vsyncadd [#allocation4], 0
      %s588 = sshll.u32 [#allocation13], 4
      %s589 = int_to_ptr.vmem [resolvable:$true] %s588
      %s590 = sshll.u32 %s9, 4
      %s591 = int_to_ptr.hbm [resolvable:$true] %s590
      %593 = dma.vmem_to_hbm [thread:$0]  %s589, 128, %s591, [#allocation4]
    $region65: #{tpu_custom_call.1} parent=1 // pred_fallthru
      _
    // Predicated region
    $region66: #{tpu_custom_call.1} parent=1 // pred_check
      _
    $region67: #{tpu_custom_call.1} parent=1 // pred_check_branch
      %595 = sbr.rel (0) target = $region69
    $region68: #{tpu_custom_call.1} parent=1 // pred_region
      %597 = vsyncadd [#allocation15], 0
      %s599 = sshll.u32 [#allocation14], 4
      %s600 = int_to_ptr.vmem [resolvable:$true] %s599
      %s601 = sshll.u32 %s10, 4
      %s602 = int_to_ptr.hbm [resolvable:$true] %s601
      %604 = dma.vmem_to_hbm [thread:$0]  %s600, 128, %s602, [#allocation15]
    $region69: #{tpu_custom_call.1} parent=1 // pred_fallthru
      _
    // Predicated region
    $region70: #{tpu_custom_call.1} parent=1 // pred_check
      _
    $region71: #{tpu_custom_call.1} parent=1 // pred_check_branch
      %606 = sbr.rel (0) target = $region73
    $region72: #{tpu_custom_call.1} parent=1 // pred_region
      %608 = dma.done [#allocation4], 128
    $region73: #{tpu_custom_call.1} parent=1 // pred_fallthru
      _
    // Predicated region
    $region74: #{tpu_custom_call.1} parent=1 // pred_check
      _
    $region75: #{tpu_custom_call.1} parent=1 // pred_check_branch
      %610 = sbr.rel (0) target = $region77
    $region76: #{tpu_custom_call.1} parent=1 // pred_region
      %612 = dma.done [#allocation15], 128
    $region77: #{tpu_custom_call.1} parent=1 // pred_fallthru
      _
    %613 = vsyncpa [#allocation3], 1
    %614 = vsyncpa [#allocation6], 1
    %615 = vsyncpa [#allocation9], 1
    %616 = vsyncpa [#allocation12], 1
    %617 = vsyncpa [#allocation4], 1
    %618 = vsyncpa [#allocation15], 1

</llo_original>
